<compile_context>
chip_gen: v7x
topology: tpu7x:2x2x1
jax: 0.10.0
libtpu: 0.0.40
codegen_flags: <defaults>
</compile_context>

<pallas_src>
import jax
import jax.numpy as jnp
from jax.experimental import pallas as pl
from jax.experimental.pallas import tpu as pltpu

_LANE = 128
_VMEM_LIMIT_BYTES = 48 * 1024 * 1024   # safe on v7x (64 MiB physical) and below


def _round_up(x, m):
    return (x + m - 1) // m * m


def _sublane_multiple(dtype):
    # Sub-32-bit dtypes pack along sublanes: f32 -> 8, bf16 -> 16, int8 -> 32.
    return max(8, 32 // jnp.dtype(dtype).itemsize)


# ----------------------------------------------------------------------------
# Kernels
# ----------------------------------------------------------------------------
def _linear_fused_kernel(x_ref, w_ref, b_ref, o_ref):
    # Whole (K, N) weight and bias are VMEM-resident; one MXU pass per M tile.
    acc = jnp.dot(x_ref[...], w_ref[...], preferred_element_type=jnp.float32)
    o_ref[...] = (acc + b_ref[...]).astype(o_ref.dtype)


def _linear_tiled_kernel(x_ref, w_ref, b_ref, o_ref, acc_ref):
    # Grid = (M tiles, N tiles, K tiles); K (axis 2) is the reduction axis.
    k = pl.program_id(2)

    @pl.when(k == 0)
    def _():
        # Fold the bias into the accumulator init (added exactly once).
        acc_ref[...] = jnp.broadcast_to(b_ref[...], acc_ref.shape)

    acc_ref[...] += jnp.dot(
        x_ref[...], w_ref[...], preferred_element_type=jnp.float32
    )

    @pl.when(k == pl.num_programs(2) - 1)
    def _():
        o_ref[...] = acc_ref[...].astype(o_ref.dtype)


# ----------------------------------------------------------------------------
# Forward
# ----------------------------------------------------------------------------
def _forward(x, w_t, b_p, d_out, compute_dtype, out_dtype,
             vmem_budget_bytes, fused_w_bytes_max):
    B, D_in = x.shape
    Kp, Np = w_t.shape            # already 128-aligned (padded at init)
    cdt = jnp.dtype(compute_dtype)
    c_bytes = cdt.itemsize
    o_bytes = jnp.dtype(out_dtype).itemsize
    sub = _sublane_multiple(cdt)

    x_c = x.astype(cdt) if x.dtype != cdt else x

    w_bytes = Kp * Np * c_bytes
    fused = w_bytes <= fused_w_bytes_max

    if fused:
        # --- Dim-reducer fast path: W + bias resident, x streamed once. -----
        per_row = 2 * (Kp * c_bytes + Np * o_bytes)      # double-buffered x+out
        avail = max(vmem_budget_bytes - 2 * w_bytes, per_row * sub)
        tm_cap = max(sub, (avail // per_row) // sub * sub)
        tm = min(1024, tm_cap, _round_up(B, sub))
        # v7x: make sure the "parallel" M axis has >= 2 blocks when B allows,
        # so work shards across both TensorCores.
        if B > sub and _round_up(B, tm) // tm < 2:
            tm = max(sub, _round_up((B + 1) // 2, sub))
        Mp = _round_up(B, tm)

        if Mp != B or Kp != D_in:
            x_c = jnp.pad(x_c, ((0, Mp - B), (0, Kp - D_in)))

        cost = pl.CostEstimate(
            flops=2 * Mp * Np * Kp,
            transcendentals=0,
            bytes_accessed=(Mp * Kp * c_bytes + Kp * Np * c_bytes
                            + Np * 4 + Mp * Np * o_bytes),
        )

        out_p = pl.pallas_call(
            _linear_fused_kernel,
            out_shape=jax.ShapeDtypeStruct((Mp, Np), out_dtype),
            grid_spec=pltpu.PrefetchScalarGridSpec(
                num_scalar_prefetch=0,
                grid=(Mp // tm,),
                in_specs=[
                    pl.BlockSpec((tm, Kp), lambda i: (i, 0)),   # x: streamed once
                    pl.BlockSpec((Kp, Np), lambda i: (0, 0)),   # W^T: VMEM-resident
                    pl.BlockSpec((1, Np), lambda i: (0, 0)),    # bias: VMEM-resident
                ],
                out_specs=pl.BlockSpec((tm, Np), lambda i: (i, 0)),
            ),
            compiler_params=pltpu.CompilerParams(
                dimension_semantics=("parallel",),
                vmem_limit_bytes=_VMEM_LIMIT_BYTES,
            ),
            cost_estimate=cost,
        )(x_c, w_t, b_p)
    else:
        # --- General tiled (M, N, K) reduction with f32 VMEM accumulator. ---
        tm = min(512, _round_up(B, sub))
        tn = min(512, Np)
        tk = min(512, Kp)
        if B > sub and _round_up(B, tm) // tm < 2:
            tm = max(sub, _round_up((B + 1) // 2, sub))
        Mp = _round_up(B, tm)
        Np_g = _round_up(Np, tn)
        Kp_g = _round_up(Kp, tk)

        if Mp != B or Kp_g != D_in:
            x_c = jnp.pad(x_c, ((0, Mp - B), (0, Kp_g - D_in)))
        w_g = w_t
        if Kp_g != Kp or Np_g != Np:
            w_g = jnp.pad(w_t, ((0, Kp_g - Kp), (0, Np_g - Np)))
        b_g = b_p
        if Np_g != Np:
            b_g = jnp.pad(b_p, ((0, 0), (0, Np_g - Np)))

        cost = pl.CostEstimate(
            flops=2 * Mp * Np_g * Kp_g,
            transcendentals=0,
            bytes_accessed=((Np_g // tn) * Mp * Kp_g * c_bytes   # x re-streamed per N tile
                            + Kp_g * Np_g * c_bytes + Np_g * 4
                            + Mp * Np_g * o_bytes),
        )

        out_p = pl.pallas_call(
            _linear_tiled_kernel,
            out_shape=jax.ShapeDtypeStruct((Mp, Np_g), out_dtype),
            grid_spec=pltpu.PrefetchScalarGridSpec(
                num_scalar_prefetch=0,
                grid=(Mp // tm, Np_g // tn, Kp_g // tk),
                in_specs=[
                    pl.BlockSpec((tm, tk), lambda i, j, k: (i, k)),   # x
                    pl.BlockSpec((tk, tn), lambda i, j, k: (k, j)),   # W^T
                    pl.BlockSpec((1, tn), lambda i, j, k: (0, j)),    # bias
                ],
                out_specs=pl.BlockSpec((tm, tn), lambda i, j, k: (i, j)),
                scratch_shapes=[pltpu.VMEM((tm, tn), jnp.float32)],
            ),
            compiler_params=pltpu.CompilerParams(
                dimension_semantics=("parallel", "parallel", "arbitrary"),
                vmem_limit_bytes=_VMEM_LIMIT_BYTES,
            ),
            cost_estimate=cost,
        )(x_c, w_g, b_g)

    return out_p[:B, :d_out]


class LinearDimReducer:
    """Pallas-TPU equivalent of the PyTorch module: y = x @ W^T + b."""

    def __init__(self, weight, bias, *,
                 compute_dtype=jnp.bfloat16,
                 vmem_budget_bytes=32 * 1024 * 1024,
                 fused_w_bytes_max=8 * 1024 * 1024):
        d_out, d_in = weight.shape
        cdt = jnp.dtype(compute_dtype)
        Kp = _round_up(d_in, _LANE)
        Np = _round_up(d_out, _LANE)

        # One-time layout plumbing, hoisted out of the per-call hot path:
        # pre-transpose W to (D_in, D_out), cast to the MXU compute dtype, pad.
        w_t = weight.T.astype(cdt)
        if Kp != d_in or Np != d_out:
            w_t = jnp.pad(w_t, ((0, Kp - d_in), (0, Np - d_out)))
        b_p = bias.reshape(1, d_out).astype(jnp.float32)
        if Np != d_out:
            b_p = jnp.pad(b_p, ((0, 0), (0, Np - d_out)))

        self.w_t = w_t
        self.b_p = b_p
        self.d_out = d_out
        self.compute_dtype = cdt
        self.vmem_budget_bytes = vmem_budget_bytes
        self.fused_w_bytes_max = fused_w_bytes_max

    def __call__(self, x):
        return _forward(x, self.w_t, self.b_p, self.d_out,
                        self.compute_dtype, x.dtype,
                        self.vmem_budget_bytes, self.fused_w_bytes_max)


def linear_dim_reducer(x, weight, bias, **kwargs):
    """Functional convenience wrapper (builds the module per call)."""
    return LinearDimReducer(weight, bias, **kwargs)(x)


if __name__ == "__main__":
    # Small deterministic example: batch=8, input_dim=32, output_dim=16
    B, D_in, D_out = 8, 32, 16
    key = jax.random.PRNGKey(0)
    kx, kw, kb = jax.random.split(key, 3)

    x = jax.random.normal(kx, (B, D_in), dtype=jnp.float32)
    bound = 1.0 / (D_in ** 0.5)
    weight = jax.random.uniform(kw, (D_out, D_in), minval=-bound, maxval=bound,
                                dtype=jnp.float32)
    bias = jax.random.uniform(kb, (D_out,), minval=-bound, maxval=bound,
                              dtype=jnp.float32)

    y_ref = x @ weight.T + bias

    # 1) Default path: bf16 MXU operands, f32 accumulation, fused grid (W resident).
    y_bf16 = LinearDimReducer(weight, bias)(x)
    jax.block_until_ready(y_bf16)
    assert y_bf16.shape == (B, D_out)
    assert jnp.allclose(y_bf16, y_ref, atol=3e-2, rtol=3e-2)

    # 2) f32 compute path (tight tolerance), still fused.
    y_f32 = LinearDimReducer(weight, bias, compute_dtype=jnp.float32)(x)
    jax.block_until_ready(y_f32)
    assert jnp.allclose(y_f32, y_ref, atol=1e-5, rtol=1e-5)

    # 3) Force the general (M, N, K) tiled-reduction path (used when W is too
    #    large for VMEM residency).
    y_tiled = LinearDimReducer(weight, bias, compute_dtype=jnp.float32,
                               fused_w_bytes_max=0)(x)
    jax.block_until_ready(y_tiled)
    assert jnp.allclose(y_tiled, y_ref, atol=1e-5, rtol=1e-5)

    print("KERNEL_OK")
</pallas_src>

<mosaic_0001>
module attributes {stable_mosaic.version = 11 : i64} {
  func.func @_linear_fused_kernel(%arg0: i32, %arg1: memref<16x128xbf16, #tpu.memory_space<vmem>>, %arg2: memref<128x128xbf16, #tpu.memory_space<vmem>>, %arg3: memref<1x128xf32, #tpu.memory_space<vmem>>, %arg4: memref<16x128xf32, #tpu.memory_space<vmem>>) attributes {dimension_semantics = [#tpu.dimension_semantics<parallel>], iteration_bounds = array<i64: 1>, scalar_prefetch = 0 : i64, scratch_operands = 0 : i64, tpu.core_type = #tpu.core_type<tc>, window_params = [{transform_indices = @transform_0, window_bounds = array<i64: 16, 128>}, {pipeline_mode = #tpu.pipeline_mode<synchronous>, transform_indices = @transform_1, window_bounds = array<i64: 128, 128>}, {pipeline_mode = #tpu.pipeline_mode<synchronous>, transform_indices = @transform_2, window_bounds = array<i64: 1, 128>}, {transform_indices = @transform_3, window_bounds = array<i64: 16, 128>}]} {
    %c0 = arith.constant 0 : index
    %c0_0 = arith.constant 0 : index
    %0 = vector.load %arg1[%c0, %c0_0] : memref<16x128xbf16, #tpu.memory_space<vmem>>, vector<16x128xbf16>
    %c0_1 = arith.constant 0 : index
    %c0_2 = arith.constant 0 : index
    %1 = vector.load %arg2[%c0_1, %c0_2] : memref<128x128xbf16, #tpu.memory_space<vmem>>, vector<128x128xbf16>
    %cst = arith.constant dense<0.000000e+00> : vector<16x128xf32>
    %2 = tpu.matmul %0, %1, %cst {dimension_numbers = #tpu.dot_dimension_numbers<[1], [0], [0], [1], [0, 0, 1, 1], [], []>} : vector<16x128xbf16>, vector<128x128xbf16>, vector<16x128xf32> -> vector<16x128xf32>
    %c0_3 = arith.constant 0 : index
    %c0_4 = arith.constant 0 : index
    %3 = vector.load %arg3[%c0_3, %c0_4] : memref<1x128xf32, #tpu.memory_space<vmem>>, vector<1x128xf32>
    %4 = vector.broadcast %3 : vector<1x128xf32> to vector<16x128xf32>
    %5 = arith.addf %2, %4 : vector<16x128xf32>
    %c0_5 = arith.constant 0 : index
    %c0_6 = arith.constant 0 : index
    %6 = vector.load %arg4[%c0_5, %c0_6] : memref<16x128xf32, #tpu.memory_space<vmem>>, vector<16x128xf32>
    tpu.vector_store %arg4[%c0_5, %c0_6], %5 {strides = array<i32>} : memref<16x128xf32, #tpu.memory_space<vmem>>, vector<16x128xf32>,
    return
  }
  func.func @transform_0(%arg0: i32) -> (i32, i32) {
    %c0_i32 = arith.constant 0 : i32
    %c0_i32_0 = arith.constant 0 : i32
    return %arg0, %c0_i32 : i32, i32
  }
  func.func @transform_1(%arg0: i32) -> (i32, i32) {
    %c0_i32 = arith.constant 0 : i32
    %c0_i32_0 = arith.constant 0 : i32
    %c0_i32_1 = arith.constant 0 : i32
    return %c0_i32, %c0_i32_0 : i32, i32
  }
  func.func @transform_2(%arg0: i32) -> (i32, i32) {
    %c0_i32 = arith.constant 0 : i32
    %c0_i32_0 = arith.constant 0 : i32
    %c0_i32_1 = arith.constant 0 : i32
    return %c0_i32, %c0_i32_0 : i32, i32
  }
  func.func @transform_3(%arg0: i32) -> (i32, i32) {
    %c0_i32 = arith.constant 0 : i32
    %c0_i32_0 = arith.constant 0 : i32
    return %arg0, %c0_i32 : i32, i32
  }
}

</mosaic_0001>

<llo_original>
// kernel: tpu_custom_call.1
$region0: #{tpu_custom_call.1}
  #allocation0 [shape = 'u32[]', space=smem, size = 0x4, offset = 0x4, fixed_abs, tag = 'smem constant byte address 0x4 - core index']
  #allocation1 [shape = 'u32[144,128]{1,0:T(1,128)}', space=vmem, size = 0x12000, scoped, tag = 'internal scratch']
  %s0 = inlined_call_operand.hbm [shape: bf16[16,128], index: 0, kind: input, shape index: {}]
  %s1 = inlined_call_operand.hbm [shape: bf16[128,128], index: 1, kind: input, shape index: {}]
  %s2 = inlined_call_operand.vmem [shape: f32[1,128], index: 2, kind: input, shape index: {}]
  %s3 = inlined_call_operand.hbm [shape: f32[16,128], index: 3, kind: output, shape index: {}]
  %s4 = sld [smem:[#allocation0]]
  $region30: #{tpu_custom_call.1} parent=0
    _
  %s6 = ssub.s32 1, %s4
  %s7 = scalar_select 0, %s6, %s4
  $region1: #{tpu_custom_call.1} parent=0
    #allocation2 [shape = 'u8[4096]{0}', space=vmem, size = 0x1000, scoped, tag = 'input window, operand 0, single buffered']
    #allocation3 [shape = 's32[1]{0}', space=sflag, size = 0x4, scoped, tag = 'scoped memory for tpu_custom_call.1']
    #allocation4 [shape = 's32[1]{0}', space=sflag, size = 0x4, scoped, tag = 'scoped memory for tpu_custom_call.1']
    #allocation5 [shape = 'u8[32768]{0}', space=vmem, size = 0x8000, scoped, tag = 'input window, operand 1, single buffered']
    #allocation6 [shape = 's32[1]{0}', space=sflag, size = 0x4, scoped, tag = 'scoped memory for tpu_custom_call.1']
    #allocation7 [shape = 'u8[8192]{0}', space=vmem, size = 0x2000, scoped, tag = 'output window, operand 0, single buffered']
    %8 = vsyncpa [#allocation3], 0
    %9 = vsyncpa [#allocation6], 0
    %10 = vsyncpa [#allocation4], 0
    // Predicated region
    $region2: #{tpu_custom_call.1} parent=1 // pred_check
      _
    $region3: #{tpu_custom_call.1} parent=1 // pred_check_branch
      %12 = sbr.rel (0) target = $region5
    $region4: #{tpu_custom_call.1} parent=1 // pred_region
      %s14 = ssub.s32 128, 128
      %15 = vsyncadd [#allocation3], %s14
      %s16 = sshll.u32 [#allocation2], 4
      %s17 = int_to_ptr.vmem [resolvable:$true] %s16
      %22 = dma.hbm_to_vmem [thread:$0]  %s0, 128, %s17, [#allocation3], 64, 64, 4
    $region5: #{tpu_custom_call.1} parent=1 // pred_fallthru
      _
    // Predicated region
    $region6: #{tpu_custom_call.1} parent=1 // pred_check
      _
    $region7: #{tpu_custom_call.1} parent=1 // pred_check_branch
      %24 = sbr.rel (0) target = $region9
    $region8: #{tpu_custom_call.1} parent=1 // pred_region
      %s26 = ssub.s32 1024, 1024
      %27 = vsyncadd [#allocation6], %s26
      %s28 = sshll.u32 [#allocation5], 4
      %s29 = int_to_ptr.vmem [resolvable:$true] %s28
      %34 = dma.hbm_to_vmem [thread:$0]  %s1, 1024, %s29, [#allocation6], 64, 64, 4
    $region9: #{tpu_custom_call.1} parent=1 // pred_fallthru
      _
    // Predicated region
    $region10: #{tpu_custom_call.1} parent=1 // pred_check
      _
    $region11: #{tpu_custom_call.1} parent=1 // pred_check_branch
      %36 = sbr.rel (0) target = $region13
    $region12: #{tpu_custom_call.1} parent=1 // pred_region
      _
    $region13: #{tpu_custom_call.1} parent=1 // pred_fallthru
      _
    // Predicated region
    $region14: #{tpu_custom_call.1} parent=1 // pred_check
      _
    $region15: #{tpu_custom_call.1} parent=1 // pred_check_branch
      %38 = sbr.rel (0) target = $region17
    $region16: #{tpu_custom_call.1} parent=1 // pred_region
      %39 = dma.done [#allocation3], 128
    $region17: #{tpu_custom_call.1} parent=1 // pred_fallthru
      _
    // Predicated region
    $region18: #{tpu_custom_call.1} parent=1 // pred_check
      _
    $region19: #{tpu_custom_call.1} parent=1 // pred_check_branch
      %41 = sbr.rel (0) target = $region21
    $region20: #{tpu_custom_call.1} parent=1 // pred_region
      %42 = dma.done [#allocation6], 1024
    $region21: #{tpu_custom_call.1} parent=1 // pred_fallthru
      _
    %v44 = vld [vmem:[#allocation2] sm:$0xf]
    %v45 = vld [vmem:[#allocation2 + $0x4] sm:$0xf]
    %v46 = vld [vmem:[#allocation5] sm:$0xf]
    %v47 = vld [vmem:[#allocation5 + $0x4] sm:$0xf]
    %v48 = vld [vmem:[#allocation5 + $0x8] sm:$0xf]
    %v49 = vld [vmem:[#allocation5 + $0xc] sm:$0xf]
    %v50 = vld [vmem:[#allocation5 + $0x10] sm:$0xf]
    %v51 = vld [vmem:[#allocation5 + $0x14] sm:$0xf]
    %v52 = vld [vmem:[#allocation5 + $0x18] sm:$0xf]
    %v53 = vld [vmem:[#allocation5 + $0x1c] sm:$0xf]
    %v54 = vld [vmem:[#allocation5 + $0x20] sm:$0xf]
    %v55 = vld [vmem:[#allocation5 + $0x24] sm:$0xf]
    %v56 = vld [vmem:[#allocation5 + $0x28] sm:$0xf]
    %v57 = vld [vmem:[#allocation5 + $0x2c] sm:$0xf]
    %v58 = vld [vmem:[#allocation5 + $0x30] sm:$0xf]
    %v59 = vld [vmem:[#allocation5 + $0x34] sm:$0xf]
    %v60 = vld [vmem:[#allocation5 + $0x38] sm:$0xf]
    %v61 = vld [vmem:[#allocation5 + $0x3c] sm:$0xf]
    %v62 = vld [vmem:[%s2] sm:$0x1]
    %v64 = vlaneseq
    %v65 = vshrl.u32 %v64, 7
    %v66 = vsub.s32 0, %v65
    %v67 = vrot.slane %v62, %v66
    %v71 = vunpack.c.l.b16 %v44
    %v72 = vunpack.c.l.b16 %v45
    %v73 = vpack.c.b16 %v72, %v71
    %v91 = vunpack.c.l.b16 %v46
    %v92 = vunpack.c.l.b16 %v47
    %v93 = vunpack.c.l.b16 %v48
    %v94 = vunpack.c.l.b16 %v49
    %v95 = vunpack.c.l.b16 %v50
    %v96 = vunpack.c.l.b16 %v51
    %v97 = vunpack.c.l.b16 %v52
    %v98 = vunpack.c.l.b16 %v53
    %v99 = vunpack.c.l.b16 %v54
    %v100 = vunpack.c.l.b16 %v55
    %v101 = vunpack.c.l.b16 %v56
    %v102 = vunpack.c.l.b16 %v57
    %v103 = vunpack.c.l.b16 %v58
    %v104 = vunpack.c.l.b16 %v59
    %v105 = vunpack.c.l.b16 %v60
    %v106 = vunpack.c.l.b16 %v61
    %v107 = vpack.c.b16 %v92, %v91
    %v108 = vpack.c.b16 %v94, %v93
    %v109 = vpack.c.b16 %v96, %v95
    %v110 = vpack.c.b16 %v98, %v97
    %v111 = vpack.c.b16 %v100, %v99
    %v112 = vpack.c.b16 %v102, %v101
    %v113 = vpack.c.b16 %v104, %v103
    %v114 = vpack.c.b16 %v106, %v105
    %123 = vmatprep.subr.bf16.mxu0 0
    %124 = vmatpush1.bf16.msra.mxu0 %v107
    %125 = vmatprep.subr.bf16.mxu0 0
    %126 = vmatpush1.bf16.msra.mxu0 %v108
    %127 = vmatprep.subr.bf16.mxu0 0
    %128 = vmatpush1.bf16.msra.mxu0 %v109
    %129 = vmatprep.subr.bf16.mxu0 0
    %130 = vmatpush1.bf16.msra.mxu0 %v110
    %131 = vmatprep.subr.bf16.mxu0 0
    %132 = vmatpush1.bf16.msra.mxu0 %v111
    %133 = vmatprep.subr.bf16.mxu0 0
    %134 = vmatpush1.bf16.msra.mxu0 %v112
    %135 = vmatprep.subr.bf16.mxu0 0
    %136 = vmatpush1.bf16.msra.mxu0 %v113
    %137 = vmatprep.subr.bf16.mxu0 0
    %138 = vmatpush1.bf16.msra.mxu0 %v114
    %139 = vmatprep.subr.bf16.mxu0 0
    %140 = vmatpush1.bf16.msra.mxu0 0
    %141 = vmatprep.subr.bf16.mxu0 0
    %142 = vmatpush1.bf16.msra.mxu0 0
    %143 = vmatprep.subr.bf16.mxu0 0
    %144 = vmatpush1.bf16.msra.mxu0 0
    %145 = vmatprep.subr.bf16.mxu0 0
    %146 = vmatpush1.bf16.msra.mxu0 0
    %147 = vmatprep.subr.bf16.mxu0 0
    %148 = vmatpush1.bf16.msra.mxu0 0
    %149 = vmatprep.subr.bf16.mxu0 0
    %150 = vmatpush1.bf16.msra.mxu0 0
    %151 = vmatprep.subr.bf16.mxu0 0
    %152 = vmatpush1.bf16.msra.mxu0 0
    %153 = vmatprep.subr.bf16.mxu0 0
    %154 = vmatpush1.bf16.msra.mxu0 0
    %155 = vmatprep.mubr.bf16.mxu0 0
    %156 = vmatmul.mubr.bf16.gmra.mrb[0].mxu0 %v73
    %v157 = vpop.f32.mrb[0].mxu0
    %v158 = vadd.f32 %v67, %v157
    %v159 = vpop.f32.mrb[0].mxu0
    %v160 = vpop.f32.mrb[0].mxu0
    %v161 = vadd.f32 %v67, %v160
    %v162 = vpop.f32.mrb[0].mxu0
    %163 = vdwg.mxu0
    %164 = vst [vmem:[#allocation7] sm:$0xff] %v158
    %165 = vst [vmem:[#allocation7 + $0x8] sm:$0xff] %v161
    // Predicated region
    $region22: #{tpu_custom_call.1} parent=1 // pred_check
      _
    $region23: #{tpu_custom_call.1} parent=1 // pred_check_branch
      %167 = sbr.rel (0) target = $region25
    $region24: #{tpu_custom_call.1} parent=1 // pred_region
      %s169 = ssub.s32 256, 256
      %170 = vsyncadd [#allocation4], %s169
      %s171 = sshll.u32 [#allocation7], 4
      %s172 = int_to_ptr.vmem [resolvable:$true] %s171
      %177 = dma.vmem_to_hbm [thread:$0]  %s172, 256, %s3, [#allocation4], 128, 128, 8
    $region25: #{tpu_custom_call.1} parent=1 // pred_fallthru
      _
    // Predicated region
    $region26: #{tpu_custom_call.1} parent=1 // pred_check
      _
    $region27: #{tpu_custom_call.1} parent=1 // pred_check_branch
      %179 = sbr.rel (0) target = $region29
    $region28: #{tpu_custom_call.1} parent=1 // pred_region
      %180 = dma.done [#allocation4], 256
    $region29: #{tpu_custom_call.1} parent=1 // pred_fallthru
      _
    %181 = vsyncpa [#allocation3], 1
    %182 = vsyncpa [#allocation6], 1
    %183 = vsyncpa [#allocation4], 1

</llo_original>
